<compile_context>
chip_gen: v7x
topology: tpu7x:2x2x1
jax: 0.10.0
libtpu: 0.0.40
codegen_flags: <defaults>
</compile_context>

<pallas_src>
import functools

import jax
import jax.numpy as jnp
from jax.experimental import pallas as pl
from jax.experimental.pallas import tpu as pltpu


def _round_up(x, m):
    return (x + m - 1) // m * m


# ----------------------------------------------------------------------------
# Pallas kernel: fused MLP feature extractor + fused 3-head predictor
#
# grid = (N_pad // TM, K_pad // TK)
#   axis 0: ROI row tiles            -> "parallel"
#   axis 1: fc6 reduction over D_in  -> "arbitrary" (VMEM accumulator)
# ----------------------------------------------------------------------------
def _box_un_head_kernel(
    x_ref,      # (TM, TK)     bf16  flattened pooled ROI features (one K tile)
    w6_ref,     # (TK, R)      bf16
    b6_ref,     # (1, R)       f32
    w7_ref,     # (R, R)       bf16
    b7_ref,     # (1, R)       f32
    wh_ref,     # (R, H_pad)   bf16  fused [cls | box | box_un] weights (lane padded)
    bh_ref,     # (1, H_pad)   f32
    feat_ref,   # out (TM, R)      f32  -> "x" returned by the head
    heads_ref,  # out (TM, H_pad)  f32  -> fused predictor outputs
    acc_ref,    # scratch (TM, R)  f32  -> fc6 accumulator
):
    k = pl.program_id(1)

    @pl.when(k == 0)
    def _():
        acc_ref[...] = jnp.zeros_like(acc_ref)

    # fc6 partial product for this K tile (bf16 inputs, f32 accumulation on MXU).
    acc_ref[...] += jnp.dot(
        x_ref[...], w6_ref[...], preferred_element_type=jnp.float32)

    @pl.when(k == pl.num_programs(1) - 1)
    def _():
        # fc6 bias + ReLU
        h6 = jnp.maximum(acc_ref[...] + b6_ref[...], 0.0)
        # fc7 + ReLU
        h7 = jnp.dot(h6.astype(w7_ref.dtype), w7_ref[...],
                     preferred_element_type=jnp.float32) + b7_ref[...]
        h7 = jnp.maximum(h7, 0.0)
        feat_ref[...] = h7.astype(feat_ref.dtype)
        # Fused predictor heads -> one well-shaped matmul, one lane-dense store.
        heads_ref[...] = (
            jnp.dot(h7.astype(wh_ref.dtype), wh_ref[...],
                    preferred_element_type=jnp.float32) + bh_ref[...]
        ).astype(heads_ref.dtype)


# ----------------------------------------------------------------------------
# Parameter preparation: fuse heads, pad lanes, cast matmul weights to bf16.
# ----------------------------------------------------------------------------
def prepare_params(params, compute_dtype=jnp.bfloat16):
    num_cls = params["wc"].shape[1]
    num_box = params["wb"].shape[1]              # 4 * num_cls
    h_total = num_cls + 2 * num_box              # 9 * num_cls
    h_pad = _round_up(h_total, 128)              # lane-dense output slab

    wh = jnp.concatenate([params["wc"], params["wb"], params["wu"]], axis=1)
    bh = jnp.concatenate([params["bc"], params["bb"], params["bu"]], axis=1)
    wh = jnp.pad(wh, ((0, 0), (0, h_pad - h_total)))
    bh = jnp.pad(bh, ((0, 0), (0, h_pad - h_total)))

    return dict(
        w6=params["w6"].astype(compute_dtype),
        b6=params["b6"].astype(jnp.float32),
        w7=params["w7"].astype(compute_dtype),
        b7=params["b7"].astype(jnp.float32),
        wh=wh.astype(compute_dtype),
        bh=bh.astype(jnp.float32),
    )


# ----------------------------------------------------------------------------
# Host wrapper: tiling plan + pallas_call
# ----------------------------------------------------------------------------
def box_un_head_pallas(x_flat, prep, *, tm=128, tk_max=2048,
                       compute_dtype=jnp.bfloat16):
    """x_flat: (N, D_in) f32. Returns (feat (N,R) f32, heads (N,H_pad) f32)."""
    n, d_in = x_flat.shape
    rep = prep["w7"].shape[0]
    h_pad = prep["wh"].shape[1]

    # --- tile plan ----------------------------------------------------------
    n_pad = _round_up(max(n, 1), tm)
    tk = tk_max if d_in >= tk_max else _round_up(d_in, 128)
    k_pad = _round_up(d_in, tk)

    # Pad activations (zero rows / zero K columns do not change the fc6 result).
    x_p = jnp.zeros((n_pad, k_pad), compute_dtype)
    x_p = x_p.at[:n, :d_in].set(x_flat.astype(compute_dtype))

    w6 = prep["w6"]
    if w6.shape[0] != k_pad:
        w6 = jnp.pad(w6, ((0, k_pad - w6.shape[0]), (0, 0)))

    grid = (n_pad // tm, k_pad // tk)

    in_specs = [
        pl.BlockSpec((tm, tk), lambda i, k: (i, k)),        # x (streamed)
        pl.BlockSpec((tk, rep), lambda i, k: (k, 0)),       # w6 (K-streamed)
        pl.BlockSpec((1, rep), lambda i, k: (0, 0)),        # b6 (resident)
        pl.BlockSpec((rep, rep), lambda i, k: (0, 0)),      # w7 (resident)
        pl.BlockSpec((1, rep), lambda i, k: (0, 0)),        # b7 (resident)
        pl.BlockSpec((rep, h_pad), lambda i, k: (0, 0)),    # fused heads W (resident)
        pl.BlockSpec((1, h_pad), lambda i, k: (0, 0)),      # fused heads b (resident)
    ]
    out_specs = (
        pl.BlockSpec((tm, rep), lambda i, k: (i, 0)),       # feat
        pl.BlockSpec((tm, h_pad), lambda i, k: (i, 0)),     # fused head outputs
    )
    out_shapes = (
        jax.ShapeDtypeStruct((n_pad, rep), jnp.float32),
        jax.ShapeDtypeStruct((n_pad, h_pad), jnp.float32),
    )

    # VMEM budget (double-buffered streams + resident weights + accumulator).
    itemsize_c = jnp.dtype(compute_dtype).itemsize
    vmem_est = (
        2 * tm * tk * itemsize_c
        + 2 * tk * rep * itemsize_c
        + 2 * (rep * rep + rep * h_pad) * itemsize_c
        + 2 * (rep + h_pad) * 4
        + 2 * tm * rep * 4
        + 2 * tm * h_pad * 4
        + tm * rep * 4
    )
    vmem_limit = int(vmem_est) + (16 << 20)   # headroom; stays < v7x's 64 MiB

    flops = 2 * n_pad * (k_pad * rep + rep * rep + rep * h_pad)
    bytes_accessed = (
        n_pad * k_pad * itemsize_c
        + (k_pad * rep + rep * rep + rep * h_pad) * itemsize_c
        + (2 * rep + h_pad) * 4
        + n_pad * (rep + h_pad) * 4
    )

    feat, heads = pl.pallas_call(
        _box_un_head_kernel,
        out_shape=out_shapes,
        grid=grid,
        in_specs=in_specs,
        out_specs=out_specs,
        scratch_shapes=[pltpu.VMEM((tm, rep), jnp.float32)],
        compiler_params=pltpu.CompilerParams(
            dimension_semantics=("parallel", "arbitrary"),
            vmem_limit_bytes=vmem_limit),
        cost_estimate=pl.CostEstimate(
            flops=flops, transcendentals=0, bytes_accessed=bytes_accessed),
    )(x_p, w6, prep["b6"], prep["w7"], prep["b7"], prep["wh"], prep["bh"])

    return feat[:n], heads[:n]


def split_head_outputs(heads, num_classes):
    c = num_classes
    class_logits = heads[:, :c]
    box_regression = heads[:, c:5 * c]
    box_regression_un = heads[:, 5 * c:9 * c]
    return class_logits, box_regression, box_regression_un


# ----------------------------------------------------------------------------
# Glue: ROIAlign pooler (data-dependent bilinear gather; kept in plain JAX)
# TODO(synk): ROIAlign's data-dependent bilinear gather has no clean Pallas
#             equivalent here; implemented as plain-JAX glue. It uses a single
#             center sample per bin (sampling_ratio=1) and no half-pixel
#             ('aligned') offset, unlike maskrcnn_benchmark's default
#             sampling_ratio=2 pooler — numerics differ slightly from PyTorch.
# ----------------------------------------------------------------------------
def roi_align_single_level(feature, rois, pooled_size, spatial_scale):
    """feature: (C, H, W); rois: (N, 4) as (x1, y1, x2, y2)."""
    C, H, W = feature.shape
    P = pooled_size

    def one_roi(box):
        x1, y1, x2, y2 = box * spatial_scale
        roi_w = jnp.maximum(x2 - x1, 1.0)
        roi_h = jnp.maximum(y2 - y1, 1.0)
        bin_w = roi_w / P
        bin_h = roi_h / P
        jj = jnp.arange(P, dtype=jnp.float32)
        xs = x1 + (jj + 0.5) * bin_w          # (P,)
        ys = y1 + (jj + 0.5) * bin_h          # (P,)
        yg, xg = jnp.meshgrid(ys, xs, indexing="ij")   # (P, P)

        yc = jnp.clip(yg, 0.0, H - 1.0)
        xc = jnp.clip(xg, 0.0, W - 1.0)
        y0 = jnp.floor(yc).astype(jnp.int32)
        x0 = jnp.floor(xc).astype(jnp.int32)
        y1i = jnp.minimum(y0 + 1, H - 1)
        x1i = jnp.minimum(x0 + 1, W - 1)
        ly = yc - y0.astype(jnp.float32)
        lx = xc - x0.astype(jnp.float32)

        v00 = feature[:, y0, x0]
        v01 = feature[:, y0, x1i]
        v10 = feature[:, y1i, x0]
        v11 = feature[:, y1i, x1i]
        out = ((1 - ly) * (1 - lx)) * v00 + ((1 - ly) * lx) * v01 \
            + (ly * (1 - lx)) * v10 + (ly * lx) * v11
        return out  # (C, P, P)

    return jax.vmap(one_roi)(rois)  # (N, C, P, P)


# ----------------------------------------------------------------------------
# Deterministic parameter init (shapes follow the PyTorch module's __init__)
# Weights stored as (in_features, out_features) so x @ W == PyTorch x @ W.T.
# ----------------------------------------------------------------------------
def init_params(key, in_channels, pooled_size, representation_size, num_classes):
    d_in = in_channels * pooled_size * pooled_size
    ks = jax.random.split(key, 5)

    def lin(kw, fan_in, fan_out, std):
        w = std * jax.random.normal(kw, (fan_in, fan_out), jnp.float32)
        b = jnp.zeros((1, fan_out), jnp.float32)
        return w, b

    w6, b6 = lin(ks[0], d_in, representation_size, 0.05)
    w7, b7 = lin(ks[1], representation_size, representation_size, 0.05)
    wc, bc = lin(ks[2], representation_size, num_classes, 0.01)
    wb, bb = lin(ks[3], representation_size, num_classes * 4, 0.001)
    wu, bu = lin(ks[4], representation_size, num_classes * 4, 0.001)
    return dict(w6=w6, b6=b6, w7=w7, b7=b7, wc=wc, bc=bc,
                wb=wb, bb=bb, wu=wu, bu=bu)


# ----------------------------------------------------------------------------
# Full head forward (inference path of ROIBoxUnHead.forward)
# ----------------------------------------------------------------------------
def roi_box_un_head_forward(feature_map, proposals, params, pooled_size, spatial_scale):
    # feature_extractor: pooler + MLP (MLP runs in the Pallas kernel)
    pooled = roi_align_single_level(feature_map, proposals, pooled_size, spatial_scale)
    n = pooled.shape[0]
    # NCHW row-major flatten == x.view(x.size(0), -1); D_in is last so this is a
    # no-copy layout change feeding the kernel.
    x_flat = pooled.reshape(n, -1)

    prep = prepare_params(params)
    feat, heads = box_un_head_pallas(x_flat, prep)
    num_classes = params["wc"].shape[1]
    class_logits, box_regression, box_regression_un = split_head_outputs(heads, num_classes)

    # TODO(synk): post_processor (box decode + NMS) and loss_evaluator (proposal
    #             subsampling, classification / box-regression / uncertainty
    #             losses) are data-dependent control flow with no clean Pallas
    #             equivalent; omitted.
    result = dict(
        class_logits=class_logits,
        box_regression=box_regression,
        box_regression_un=box_regression_un,
    )
    return feat, result, {}


# ----------------------------------------------------------------------------
# Pure-JAX reference mirroring the kernel's bf16-input / f32-accum numerics.
# ----------------------------------------------------------------------------
def _reference_forward(x_flat, params, compute_dtype=jnp.bfloat16):
    cd = lambda a: a.astype(compute_dtype).astype(jnp.float32)
    x = cd(x_flat)
    h6 = jnp.maximum(x @ cd(params["w6"]) + params["b6"], 0.0)
    h7 = jnp.maximum(cd(h6) @ cd(params["w7"]) + params["b7"], 0.0)
    h7c = cd(h7)
    cls = h7c @ cd(params["wc"]) + params["bc"]
    box = h7c @ cd(params["wb"]) + params["bb"]
    un = h7c @ cd(params["wu"]) + params["bu"]
    return h7, cls, box, un


if __name__ == "__main__":
    key = jax.random.PRNGKey(0)
    k_feat, k_ctr, k_half, k_par = jax.random.split(key, 4)

    # Small synthetic config
    in_channels = 4
    H = W = 16
    pooled_size = 4
    spatial_scale = 1.0
    representation_size = 32
    num_classes = 5
    num_rois = 8

    # Single-level feature map (C, H, W) and synthetic proposals (x1, y1, x2, y2)
    feature_map = jax.random.normal(k_feat, (in_channels, H, W), jnp.float32)
    ctr = jax.random.uniform(k_ctr, (num_rois, 2), minval=4.0, maxval=12.0)
    half = jax.random.uniform(k_half, (num_rois, 2), minval=2.0, maxval=4.0)
    proposals = jnp.concatenate([ctr - half, ctr + half], axis=-1)  # (N, 4)

    params = init_params(k_par, in_channels, pooled_size, representation_size, num_classes)

    feat, result, losses = roi_box_un_head_forward(
        feature_map, proposals, params, pooled_size, spatial_scale)
    jax.block_until_ready((feat, result))

    # Shape checks
    assert feat.shape == (num_rois, representation_size)
    assert result["class_logits"].shape == (num_rois, num_classes)
    assert result["box_regression"].shape == (num_rois, num_classes * 4)
    assert result["box_regression_un"].shape == (num_rois, num_classes * 4)
    assert losses == {}

    # Numerical check against pure-JAX reference with matching precision policy.
    pooled = roi_align_single_level(feature_map, proposals, pooled_size, spatial_scale)
    x_flat = pooled.reshape(num_rois, -1)
    r_feat, r_cls, r_box, r_un = _reference_forward(x_flat, params)
    assert jnp.allclose(feat, r_feat, atol=1e-3, rtol=1e-2)
    assert jnp.allclose(result["class_logits"], r_cls, atol=1e-3, rtol=1e-2)
    assert jnp.allclose(result["box_regression"], r_box, atol=1e-3, rtol=1e-2)
    assert jnp.allclose(result["box_regression_un"], r_un, atol=1e-3, rtol=1e-2)

    print("KERNEL_OK")
</pallas_src>

<mosaic_0001>
module attributes {stable_mosaic.version = 11 : i64} {
  func.func @_box_un_head_kernel(%arg0: i32, %arg1: i32, %arg2: memref<128x128xbf16, #tpu.memory_space<vmem>>, %arg3: memref<128x32xbf16, #tpu.memory_space<vmem>>, %arg4: memref<1x32xf32, #tpu.memory_space<vmem>>, %arg5: memref<32x32xbf16, #tpu.memory_space<vmem>>, %arg6: memref<1x32xf32, #tpu.memory_space<vmem>>, %arg7: memref<32x128xbf16, #tpu.memory_space<vmem>>, %arg8: memref<1x128xf32, #tpu.memory_space<vmem>>, %arg9: memref<128x32xf32, #tpu.memory_space<vmem>>, %arg10: memref<128x128xf32, #tpu.memory_space<vmem>>, %arg11: memref<128x32xf32, #tpu.memory_space<vmem>>) attributes {dimension_semantics = [#tpu.dimension_semantics<parallel>, #tpu.dimension_semantics<arbitrary>], iteration_bounds = array<i64: 1, 1>, scalar_prefetch = 0 : i64, scratch_operands = 1 : i64, tpu.core_type = #tpu.core_type<tc>, window_params = [{transform_indices = @transform_0, window_bounds = array<i64: 128, 128>}, {transform_indices = @transform_1, window_bounds = array<i64: 128, 32>}, {pipeline_mode = #tpu.pipeline_mode<synchronous>, transform_indices = @transform_2, window_bounds = array<i64: 1, 32>}, {pipeline_mode = #tpu.pipeline_mode<synchronous>, transform_indices = @transform_3, window_bounds = array<i64: 32, 32>}, {pipeline_mode = #tpu.pipeline_mode<synchronous>, transform_indices = @transform_4, window_bounds = array<i64: 1, 32>}, {pipeline_mode = #tpu.pipeline_mode<synchronous>, transform_indices = @transform_5, window_bounds = array<i64: 32, 128>}, {pipeline_mode = #tpu.pipeline_mode<synchronous>, transform_indices = @transform_6, window_bounds = array<i64: 1, 128>}, {transform_indices = @transform_7, window_bounds = array<i64: 128, 32>}, {transform_indices = @transform_8, window_bounds = array<i64: 128, 128>}]} {
    %c0_i32 = arith.constant 0 : i32
    %0 = arith.cmpi eq, %arg1, %c0_i32 : i32
    %1 = arith.extui %0 : i1 to i32
    %c0_i32_0 = arith.constant 0 : i32
    %2 = arith.cmpi ne, %1, %c0_i32_0 : i32
    scf.if %2 {
      %cst_10 = arith.constant 0.000000e+00 : f32
      %12 = vector.broadcast %cst_10 : f32 to vector<128x32xf32>
      %c0_11 = arith.constant 0 : index
      %c0_12 = arith.constant 0 : index
      %13 = vector.load %arg11[%c0_11, %c0_12] : memref<128x32xf32, #tpu.memory_space<vmem>>, vector<128x32xf32>
      tpu.vector_store %arg11[%c0_11, %c0_12], %12 {strides = array<i32>} : memref<128x32xf32, #tpu.memory_space<vmem>>, vector<128x32xf32>,
    } else {
    }
    %c0 = arith.constant 0 : index
    %c0_1 = arith.constant 0 : index
    %3 = vector.load %arg11[%c0, %c0_1] : memref<128x32xf32, #tpu.memory_space<vmem>>, vector<128x32xf32>
    %c0_2 = arith.constant 0 : index
    %c0_3 = arith.constant 0 : index
    %4 = vector.load %arg2[%c0_2, %c0_3] : memref<128x128xbf16, #tpu.memory_space<vmem>>, vector<128x128xbf16>
    %c0_4 = arith.constant 0 : index
    %c0_5 = arith.constant 0 : index
    %5 = vector.load %arg3[%c0_4, %c0_5] : memref<128x32xbf16, #tpu.memory_space<vmem>>, vector<128x32xbf16>
    %cst = arith.constant dense<0.000000e+00> : vector<128x32xf32>
    %6 = tpu.matmul %4, %5, %cst {dimension_numbers = #tpu.dot_dimension_numbers<[1], [0], [0], [1], [0, 0, 1, 1], [], []>} : vector<128x128xbf16>, vector<128x32xbf16>, vector<128x32xf32> -> vector<128x32xf32>
    %7 = arith.addf %3, %6 : vector<128x32xf32>
    %c0_6 = arith.constant 0 : index
    %c0_7 = arith.constant 0 : index
    %8 = vector.load %arg11[%c0_6, %c0_7] : memref<128x32xf32, #tpu.memory_space<vmem>>, vector<128x32xf32>
    tpu.vector_store %arg11[%c0_6, %c0_7], %7 {strides = array<i32>} : memref<128x32xf32, #tpu.memory_space<vmem>>, vector<128x32xf32>,
    %c0_i32_8 = arith.constant 0 : i32
    %9 = arith.cmpi eq, %arg1, %c0_i32_8 : i32
    %10 = arith.extui %9 : i1 to i32
    %c0_i32_9 = arith.constant 0 : i32
    %11 = arith.cmpi ne, %10, %c0_i32_9 : i32
    scf.if %11 {
      %c0_10 = arith.constant 0 : index
      %c0_11 = arith.constant 0 : index
      %12 = vector.load %arg11[%c0_10, %c0_11] : memref<128x32xf32, #tpu.memory_space<vmem>>, vector<128x32xf32>
      %c0_12 = arith.constant 0 : index
      %c0_13 = arith.constant 0 : index
      %13 = vector.load %arg4[%c0_12, %c0_13] : memref<1x32xf32, #tpu.memory_space<vmem>>, vector<1x32xf32>
      %14 = vector.broadcast %13 : vector<1x32xf32> to vector<128x32xf32>
      %15 = arith.addf %12, %14 : vector<128x32xf32>
      %cst_14 = arith.constant 0.000000e+00 : f32
      %16 = vector.broadcast %cst_14 : f32 to vector<128x32xf32>
      %17 = arith.maximumf %15, %16 : vector<128x32xf32>
      %18 = arith.truncf %17 : vector<128x32xf32> to vector<128x32xbf16>
      %c0_15 = arith.constant 0 : index
      %c0_16 = arith.constant 0 : index
      %19 = vector.load %arg5[%c0_15, %c0_16] : memref<32x32xbf16, #tpu.memory_space<vmem>>, vector<32x32xbf16>
      %cst_17 = arith.constant dense<0.000000e+00> : vector<128x32xf32>
      %20 = tpu.matmul %18, %19, %cst_17 {dimension_numbers = #tpu.dot_dimension_numbers<[1], [0], [0], [1], [0, 0, 1, 1], [], []>} : vector<128x32xbf16>, vector<32x32xbf16>, vector<128x32xf32> -> vector<128x32xf32>
      %c0_18 = arith.constant 0 : index
      %c0_19 = arith.constant 0 : index
      %21 = vector.load %arg6[%c0_18, %c0_19] : memref<1x32xf32, #tpu.memory_space<vmem>>, vector<1x32xf32>
      %22 = vector.broadcast %21 : vector<1x32xf32> to vector<128x32xf32>
      %23 = arith.addf %20, %22 : vector<128x32xf32>
      %cst_20 = arith.constant 0.000000e+00 : f32
      %24 = vector.broadcast %cst_20 : f32 to vector<128x32xf32>
      %25 = arith.maximumf %23, %24 : vector<128x32xf32>
      %c0_21 = arith.constant 0 : index
      %c0_22 = arith.constant 0 : index
      %26 = vector.load %arg9[%c0_21, %c0_22] : memref<128x32xf32, #tpu.memory_space<vmem>>, vector<128x32xf32>
      tpu.vector_store %arg9[%c0_21, %c0_22], %25 {strides = array<i32>} : memref<128x32xf32, #tpu.memory_space<vmem>>, vector<128x32xf32>,
      %27 = arith.truncf %25 : vector<128x32xf32> to vector<128x32xbf16>
      %c0_23 = arith.constant 0 : index
      %c0_24 = arith.constant 0 : index
      %28 = vector.load %arg7[%c0_23, %c0_24] : memref<32x128xbf16, #tpu.memory_space<vmem>>, vector<32x128xbf16>
      %cst_25 = arith.constant dense<0.000000e+00> : vector<128x128xf32>
      %29 = tpu.matmul %27, %28, %cst_25 {dimension_numbers = #tpu.dot_dimension_numbers<[1], [0], [0], [1], [0, 0, 1, 1], [], []>} : vector<128x32xbf16>, vector<32x128xbf16>, vector<128x128xf32> -> vector<128x128xf32>
      %c0_26 = arith.constant 0 : index
      %c0_27 = arith.constant 0 : index
      %30 = vector.load %arg8[%c0_26, %c0_27] : memref<1x128xf32, #tpu.memory_space<vmem>>, vector<1x128xf32>
      %31 = vector.broadcast %30 : vector<1x128xf32> to vector<128x128xf32>
      %32 = arith.addf %29, %31 : vector<128x128xf32>
      %c0_28 = arith.constant 0 : index
      %c0_29 = arith.constant 0 : index
      %33 = vector.load %arg10[%c0_28, %c0_29] : memref<128x128xf32, #tpu.memory_space<vmem>>, vector<128x128xf32>
      tpu.vector_store %arg10[%c0_28, %c0_29], %32 {strides = array<i32>} : memref<128x128xf32, #tpu.memory_space<vmem>>, vector<128x128xf32>,
    } else {
    }
    return
  }
  func.func @transform_0(%arg0: i32, %arg1: i32) -> (i32, i32) {
    %c0_i32 = arith.constant 0 : i32
    return %arg0, %arg1 : i32, i32
  }
  func.func @transform_1(%arg0: i32, %arg1: i32) -> (i32, i32) {
    %c0_i32 = arith.constant 0 : i32
    %c0_i32_0 = arith.constant 0 : i32
    return %arg1, %c0_i32 : i32, i32
  }
  func.func @transform_2(%arg0: i32, %arg1: i32) -> (i32, i32) {
    %c0_i32 = arith.constant 0 : i32
    %c0_i32_0 = arith.constant 0 : i32
    %c0_i32_1 = arith.constant 0 : i32
    return %c0_i32, %c0_i32_0 : i32, i32
  }
  func.func @transform_3(%arg0: i32, %arg1: i32) -> (i32, i32) {
    %c0_i32 = arith.constant 0 : i32
    %c0_i32_0 = arith.constant 0 : i32
    %c0_i32_1 = arith.constant 0 : i32
    return %c0_i32, %c0_i32_0 : i32, i32
  }
  func.func @transform_4(%arg0: i32, %arg1: i32) -> (i32, i32) {
    %c0_i32 = arith.constant 0 : i32
    %c0_i32_0 = arith.constant 0 : i32
    %c0_i32_1 = arith.constant 0 : i32
    return %c0_i32, %c0_i32_0 : i32, i32
  }
  func.func @transform_5(%arg0: i32, %arg1: i32) -> (i32, i32) {
    %c0_i32 = arith.constant 0 : i32
    %c0_i32_0 = arith.constant 0 : i32
    %c0_i32_1 = arith.constant 0 : i32
    return %c0_i32, %c0_i32_0 : i32, i32
  }
  func.func @transform_6(%arg0: i32, %arg1: i32) -> (i32, i32) {
    %c0_i32 = arith.constant 0 : i32
    %c0_i32_0 = arith.constant 0 : i32
    %c0_i32_1 = arith.constant 0 : i32
    return %c0_i32, %c0_i32_0 : i32, i32
  }
  func.func @transform_7(%arg0: i32, %arg1: i32) -> (i32, i32) {
    %c0_i32 = arith.constant 0 : i32
    %c0_i32_0 = arith.constant 0 : i32
    return %arg0, %c0_i32 : i32, i32
  }
  func.func @transform_8(%arg0: i32, %arg1: i32) -> (i32, i32) {
    %c0_i32 = arith.constant 0 : i32
    %c0_i32_0 = arith.constant 0 : i32
    return %arg0, %c0_i32 : i32, i32
  }
}

</mosaic_0001>

<llo_original>
// kernel: tpu_custom_call.1
$region0: #{tpu_custom_call.1}
  #allocation0 [shape = 'u32[]', space=smem, size = 0x4, offset = 0x4, fixed_abs, tag = 'smem constant byte address 0x4 - core index']
  #allocation1 [shape = 'u32[144,128]{1,0:T(1,128)}', space=vmem, size = 0x12000, scoped, tag = 'internal scratch']
  #allocation2 [shape = 'f32[128,32]{1,0:T(8,128)}', space=vmem, size = 0x10000, scoped, tag = 'scratch operand']
  %s0 = inlined_call_operand.vmem [shape: bf16[128,128], index: 0, kind: input, shape index: {}]
  %s1 = inlined_call_operand.vmem [shape: bf16[128,32], index: 1, kind: input, shape index: {}]
  %s2 = inlined_call_operand.vmem [shape: f32[1,32], index: 2, kind: input, shape index: {}]
  %s3 = inlined_call_operand.vmem [shape: bf16[32,32], index: 3, kind: input, shape index: {}]
  %s4 = inlined_call_operand.vmem [shape: f32[1,32], index: 4, kind: input, shape index: {}]
  %s5 = inlined_call_operand.vmem [shape: bf16[32,128], index: 5, kind: input, shape index: {}]
  %s6 = inlined_call_operand.vmem [shape: f32[1,128], index: 6, kind: input, shape index: {}]
  %s7 = inlined_call_operand.vmem [shape: f32[128,32], index: 7, kind: output, shape index: {0}]
  %s8 = inlined_call_operand.hbm [shape: f32[128,128], index: 8, kind: output, shape index: {1}]
  %9 = xla_tuple %s7, %s8
  %s10 = sld [smem:[#allocation0]]
  $region54: #{tpu_custom_call.1} parent=0
    _
  %s12 = ssub.s32 1, %s10
  %s13 = scalar_select 0, %s12, %s10
  $region1: #{tpu_custom_call.1} parent=0
    #allocation3 [shape = 'u8[65536]{0}', space=vmem, size = 0x10000, scoped, tag = 'output window, operand 1, single buffered']
    #allocation4 [shape = 's32[1]{0}', space=sflag, size = 0x4, scoped, tag = 'scoped memory for tpu_custom_call.1']
    %14 = vsyncpa [#allocation4], 0
    // Predicated region
    $region2: #{tpu_custom_call.1} parent=1 // pred_check
      _
    $region3: #{tpu_custom_call.1} parent=1 // pred_check_branch
      %16 = sbr.rel (0) target = $region5
    $region4: #{tpu_custom_call.1} parent=1 // pred_region
      _
    $region5: #{tpu_custom_call.1} parent=1 // pred_fallthru
      _
    // Predicated region
    $region6: #{tpu_custom_call.1} parent=1 // pred_check
      _
    $region7: #{tpu_custom_call.1} parent=1 // pred_check_branch
      %18 = sbr.rel (0) target = $region9
    $region8: #{tpu_custom_call.1} parent=1 // pred_region
      _
    $region9: #{tpu_custom_call.1} parent=1 // pred_fallthru
      _
    // Predicated region
    $region10: #{tpu_custom_call.1} parent=1 // pred_check
      _
    $region11: #{tpu_custom_call.1} parent=1 // pred_check_branch
      %20 = sbr.rel (0) target = $region13
    $region12: #{tpu_custom_call.1} parent=1 // pred_region
      _
    $region13: #{tpu_custom_call.1} parent=1 // pred_fallthru
      _
    // Predicated region
    $region14: #{tpu_custom_call.1} parent=1 // pred_check
      _
    $region15: #{tpu_custom_call.1} parent=1 // pred_check_branch
      %22 = sbr.rel (0) target = $region17
    $region16: #{tpu_custom_call.1} parent=1 // pred_region
      _
    $region17: #{tpu_custom_call.1} parent=1 // pred_fallthru
      _
    // Predicated region
    $region18: #{tpu_custom_call.1} parent=1 // pred_check
      _
    $region19: #{tpu_custom_call.1} parent=1 // pred_check_branch
      %24 = sbr.rel (0) target = $region21
    $region20: #{tpu_custom_call.1} parent=1 // pred_region
      _
    $region21: #{tpu_custom_call.1} parent=1 // pred_fallthru
      _
    // Predicated region
    $region22: #{tpu_custom_call.1} parent=1 // pred_check
      _
    $region23: #{tpu_custom_call.1} parent=1 // pred_check_branch
      %26 = sbr.rel (0) target = $region25
    $region24: #{tpu_custom_call.1} parent=1 // pred_region
      _
    $region25: #{tpu_custom_call.1} parent=1 // pred_fallthru
      _
    // Predicated region
    $region26: #{tpu_custom_call.1} parent=1 // pred_check
      _
    $region27: #{tpu_custom_call.1} parent=1 // pred_check_branch
      %28 = sbr.rel (0) target = $region29
    $region28: #{tpu_custom_call.1} parent=1 // pred_region
      _
    $region29: #{tpu_custom_call.1} parent=1 // pred_fallthru
      _
    %p30 = scmp.eq.s32.totalorder 0, 0
    // Predicated region
    $region30: #{tpu_custom_call.1} parent=1 // pred_check
      %p31 = pneg %p30
    $region31: #{tpu_custom_call.1} parent=1 // pred_check_branch
      %33 = sbr.rel (%p31) target = $region33
    $region32: #{tpu_custom_call.1} parent=1 // pred_region
      %vm34 = vcmask 261120
      %35 = vst.msk [vmem:[#allocation2] sm:$0xff] %vm34, 0.0
      %36 = vst.msk [vmem:[#allocation2 + $0x8] sm:$0xff] %vm34, 0.0
      %37 = vst.msk [vmem:[#allocation2 + $0x10] sm:$0xff] %vm34, 0.0
      %38 = vst.msk [vmem:[#allocation2 + $0x18] sm:$0xff] %vm34, 0.0
      %39 = vst.msk [vmem:[#allocation2 + $0x20] sm:$0xff] %vm34, 0.0
      %40 = vst.msk [vmem:[#allocation2 + $0x28] sm:$0xff] %vm34, 0.0
      %41 = vst.msk [vmem:[#allocation2 + $0x30] sm:$0xff] %vm34, 0.0
      %42 = vst.msk [vmem:[#allocation2 + $0x38] sm:$0xff] %vm34, 0.0
      %43 = vst.msk [vmem:[#allocation2 + $0x40] sm:$0xff] %vm34, 0.0
      %44 = vst.msk [vmem:[#allocation2 + $0x48] sm:$0xff] %vm34, 0.0
      %45 = vst.msk [vmem:[#allocation2 + $0x50] sm:$0xff] %vm34, 0.0
      %46 = vst.msk [vmem:[#allocation2 + $0x58] sm:$0xff] %vm34, 0.0
      %47 = vst.msk [vmem:[#allocation2 + $0x60] sm:$0xff] %vm34, 0.0
      %48 = vst.msk [vmem:[#allocation2 + $0x68] sm:$0xff] %vm34, 0.0
      %49 = vst.msk [vmem:[#allocation2 + $0x70] sm:$0xff] %vm34, 0.0
      %50 = vst.msk [vmem:[#allocation2 + $0x78] sm:$0xff] %vm34, 0.0
    $region33: #{tpu_custom_call.1} parent=1 // pred_fallthru
      _
    %v51 = vld [vmem:[#allocation2] sm:$0xff]
    %v52 = vld [vmem:[#allocation2 + $0x8] sm:$0xff]
    %v53 = vld [vmem:[#allocation2 + $0x10] sm:$0xff]
    %v54 = vld [vmem:[#allocation2 + $0x18] sm:$0xff]
    %v55 = vld [vmem:[#allocation2 + $0x20] sm:$0xff]
    %v56 = vld [vmem:[#allocation2 + $0x28] sm:$0xff]
    %v57 = vld [vmem:[#allocation2 + $0x30] sm:$0xff]
    %v58 = vld [vmem:[#allocation2 + $0x38] sm:$0xff]
    %v59 = vld [vmem:[#allocation2 + $0x40] sm:$0xff]
    %v60 = vld [vmem:[#allocation2 + $0x48] sm:$0xff]
    %v61 = vld [vmem:[#allocation2 + $0x50] sm:$0xff]
    %v62 = vld [vmem:[#allocation2 + $0x58] sm:$0xff]
    %v63 = vld [vmem:[#allocation2 + $0x60] sm:$0xff]
    %v64 = vld [vmem:[#allocation2 + $0x68] sm:$0xff]
    %v65 = vld [vmem:[#allocation2 + $0x70] sm:$0xff]
    %v66 = vld [vmem:[#allocation2 + $0x78] sm:$0xff]
    %v67 = vld [vmem:[%s0] sm:$0xf]
    %v68 = vld [vmem:[%s0 + $0x4] sm:$0xf]
    %v69 = vld [vmem:[%s0 + $0x8] sm:$0xf]
    %v70 = vld [vmem:[%s0 + $0xc] sm:$0xf]
    %v71 = vld [vmem:[%s0 + $0x10] sm:$0xf]
    %v72 = vld [vmem:[%s0 + $0x14] sm:$0xf]
    %v73 = vld [vmem:[%s0 + $0x18] sm:$0xf]
    %v74 = vld [vmem:[%s0 + $0x1c] sm:$0xf]
    %v75 = vld [vmem:[%s0 + $0x20] sm:$0xf]
    %v76 = vld [vmem:[%s0 + $0x24] sm:$0xf]
    %v77 = vld [vmem:[%s0 + $0x28] sm:$0xf]
    %v78 = vld [vmem:[%s0 + $0x2c] sm:$0xf]
    %v79 = vld [vmem:[%s0 + $0x30] sm:$0xf]
    %v80 = vld [vmem:[%s0 + $0x34] sm:$0xf]
    %v81 = vld [vmem:[%s0 + $0x38] sm:$0xf]
    %v82 = vld [vmem:[%s0 + $0x3c] sm:$0xf]
    %v83 = vld [vmem:[%s1] sm:$0xf]
    %v84 = vld [vmem:[%s1 + $0x4] sm:$0xf]
    %v85 = vld [vmem:[%s1 + $0x8] sm:$0xf]
    %v86 = vld [vmem:[%s1 + $0xc] sm:$0xf]
    %v87 = vld [vmem:[%s1 + $0x10] sm:$0xf]
    %v88 = vld [vmem:[%s1 + $0x14] sm:$0xf]
    %v89 = vld [vmem:[%s1 + $0x18] sm:$0xf]
    %v90 = vld [vmem:[%s1 + $0x1c] sm:$0xf]
    %v91 = vld [vmem:[%s1 + $0x20] sm:$0xf]
    %v92 = vld [vmem:[%s1 + $0x24] sm:$0xf]
    %v93 = vld [vmem:[%s1 + $0x28] sm:$0xf]
    %v94 = vld [vmem:[%s1 + $0x2c] sm:$0xf]
    %v95 = vld [vmem:[%s1 + $0x30] sm:$0xf]
    %v96 = vld [vmem:[%s1 + $0x34] sm:$0xf]
    %v97 = vld [vmem:[%s1 + $0x38] sm:$0xf]
    %v98 = vld [vmem:[%s1 + $0x3c] sm:$0xf]
    %v115 = vunpack.c.l.b16 %v67
    %v116 = vunpack.c.l.b16 %v68
    %v117 = vunpack.c.l.b16 %v69
    %v118 = vunpack.c.l.b16 %v70
    %v119 = vunpack.c.l.b16 %v71
    %v120 = vunpack.c.l.b16 %v72
    %v121 = vunpack.c.l.b16 %v73
    %v122 = vunpack.c.l.b16 %v74
    %v123 = vunpack.c.l.b16 %v75
    %v124 = vunpack.c.l.b16 %v76
    %v125 = vunpack.c.l.b16 %v77
    %v126 = vunpack.c.l.b16 %v78
    %v127 = vunpack.c.l.b16 %v79
    %v128 = vunpack.c.l.b16 %v80
    %v129 = vunpack.c.l.b16 %v81
    %v130 = vunpack.c.l.b16 %v82
    %v131 = vpack.c.b16 %v116, %v115
    %v132 = vpack.c.b16 %v118, %v117
    %v133 = vpack.c.b16 %v120, %v119
    %v134 = vpack.c.b16 %v122, %v121
    %v135 = vpack.c.b16 %v124, %v123
    %v136 = vpack.c.b16 %v126, %v125
    %v137 = vpack.c.b16 %v128, %v127
    %v138 = vpack.c.b16 %v130, %v129
    %v163 = vunpack.c.l.b16 %v83
    %v164 = vunpack.c.l.b16 %v84
    %v165 = vunpack.c.l.b16 %v85
    %v166 = vunpack.c.l.b16 %v86
    %v167 = vunpack.c.l.b16 %v87
    %v168 = vunpack.c.l.b16 %v88
    %v169 = vunpack.c.l.b16 %v89
    %v170 = vunpack.c.l.b16 %v90
    %v171 = vunpack.c.l.b16 %v91
    %v172 = vunpack.c.l.b16 %v92
    %v173 = vunpack.c.l.b16 %v93
    %v174 = vunpack.c.l.b16 %v94
    %v175 = vunpack.c.l.b16 %v95
    %v176 = vunpack.c.l.b16 %v96
    %v177 = vunpack.c.l.b16 %v97
    %v178 = vunpack.c.l.b16 %v98
    %v179 = vpack.c.b16 %v164, %v163
    %v180 = vpack.c.b16 %v166, %v165
    %v181 = vpack.c.b16 %v168, %v167
    %v182 = vpack.c.b16 %v170, %v169
    %v183 = vpack.c.b16 %v172, %v171
    %v184 = vpack.c.b16 %v174, %v173
    %v185 = vpack.c.b16 %v176, %v175
    %v186 = vpack.c.b16 %v178, %v177
    %195 = vmatprep.subr.bf16.mxu0 0
    %196 = vmatpush1.bf16.msra.mxu0 %v179
    %197 = vmatprep.subr.bf16.mxu0 0
    %198 = vmatpush1.bf16.msra.mxu0 %v180
    %199 = vmatprep.subr.bf16.mxu0 0
    %200 = vmatpush1.bf16.msra.mxu0 %v181
    %201 = vmatprep.subr.bf16.mxu0 0
    %202 = vmatpush1.bf16.msra.mxu0 %v182
    %203 = vmatprep.subr.bf16.mxu0 0
    %204 = vmatpush1.bf16.msra.mxu0 %v183
    %205 = vmatprep.subr.bf16.mxu0 0
    %206 = vmatpush1.bf16.msra.mxu0 %v184
    %207 = vmatprep.subr.bf16.mxu0 0
    %208 = vmatpush1.bf16.msra.mxu0 %v185
    %209 = vmatprep.subr.bf16.mxu0 0
    %210 = vmatpush1.bf16.msra.mxu0 %v186
    %211 = vmatprep.subr.bf16.mxu0 0
    %212 = vmatpush1.bf16.msra.mxu0 0
    %213 = vmatprep.subr.bf16.mxu0 0
    %214 = vmatpush1.bf16.msra.mxu0 0
    %215 = vmatprep.subr.bf16.mxu0 0
    %216 = vmatpush1.bf16.msra.mxu0 0
    %217 = vmatprep.subr.bf16.mxu0 0
    %218 = vmatpush1.bf16.msra.mxu0 0
    %219 = vmatprep.subr.bf16.mxu0 0
    %220 = vmatpush1.bf16.msra.mxu0 0
    %221 = vmatprep.subr.bf16.mxu0 0
    %222 = vmatpush1.bf16.msra.mxu0 0
    %223 = vmatprep.subr.bf16.mxu0 0
    %224 = vmatpush1.bf16.msra.mxu0 0
    %225 = vmatprep.subr.bf16.mxu0 0
    %226 = vmatpush1.bf16.msra.mxu0 0
    %227 = vmatprep.mubr.bf16.mxu0 0
    %228 = vmatmul.mubr.bf16.gmra.mrb[0].mxu0 %v131
    %v229 = vpop.f32.mrb[0].mxu0
    %v230 = vadd.f32 0.0, %v229
    %v231 = vpop.f32.mrb[0].mxu0
    %v232 = vpop.f32.mrb[0].mxu0
    %v233 = vadd.f32 0.0, %v232
    %v234 = vpop.f32.mrb[0].mxu0
    %235 = vmatprep.mubr.bf16.mxu0 0
    %236 = vmatmul.mubr.bf16.gmra.mrb[0].mxu0 %v132
    %v237 = vpop.f32.mrb[0].mxu0
    %v238 = vadd.f32 0.0, %v237
    %v239 = vpop.f32.mrb[0].mxu0
    %v240 = vpop.f32.mrb[0].mxu0
    %v241 = vadd.f32 0.0, %v240
    %v242 = vpop.f32.mrb[0].mxu0
    %243 = vmatprep.mubr.bf16.mxu0 0
    %244 = vmatmul.mubr.bf16.gmra.mrb[0].mxu0 %v133
    %v245 = vpop.f32.mrb[0].mxu0
    %v246 = vadd.f32 0.0, %v245
    %v247 = vpop.f32.mrb[0].mxu0
    %v248 = vpop.f32.mrb[0].mxu0
    %v249 = vadd.f32 0.0, %v248
    %v250 = vpop.f32.mrb[0].mxu0
    %251 = vmatprep.mubr.bf16.mxu0 0
    %252 = vmatmul.mubr.bf16.gmra.mrb[0].mxu0 %v134
    %v253 = vpop.f32.mrb[0].mxu0
    %v254 = vadd.f32 0.0, %v253
    %v255 = vpop.f32.mrb[0].mxu0
    %v256 = vpop.f32.mrb[0].mxu0
    %v257 = vadd.f32 0.0, %v256
    %v258 = vpop.f32.mrb[0].mxu0
    %259 = vmatprep.mubr.bf16.mxu0 0
    %260 = vmatmul.mubr.bf16.gmra.mrb[0].mxu0 %v135
    %v261 = vpop.f32.mrb[0].mxu0
    %v262 = vadd.f32 0.0, %v261
    %v263 = vpop.f32.mrb[0].mxu0
    %v264 = vpop.f32.mrb[0].mxu0
    %v265 = vadd.f32 0.0, %v264
    %v266 = vpop.f32.mrb[0].mxu0
    %267 = vmatprep.mubr.bf16.mxu0 0
    %268 = vmatmul.mubr.bf16.gmra.mrb[0].mxu0 %v136
    %v269 = vpop.f32.mrb[0].mxu0
    %v270 = vadd.f32 0.0, %v269
    %v271 = vpop.f32.mrb[0].mxu0
    %v272 = vpop.f32.mrb[0].mxu0
    %v273 = vadd.f32 0.0, %v272
    %v274 = vpop.f32.mrb[0].mxu0
    %275 = vmatprep.mubr.bf16.mxu0 0
    %276 = vmatmul.mubr.bf16.gmra.mrb[0].mxu0 %v137
    %v277 = vpop.f32.mrb[0].mxu0
    %v278 = vadd.f32 0.0, %v277
    %v279 = vpop.f32.mrb[0].mxu0
    %v280 = vpop.f32.mrb[0].mxu0
    %v281 = vadd.f32 0.0, %v280
    %v282 = vpop.f32.mrb[0].mxu0
    %283 = vmatprep.mubr.bf16.mxu0 0
    %284 = vmatmul.mubr.bf16.gmra.mrb[0].mxu0 %v138
    %v285 = vpop.f32.mrb[0].mxu0
    %v286 = vadd.f32 0.0, %v285
    %v287 = vpop.f32.mrb[0].mxu0
    %v288 = vpop.f32.mrb[0].mxu0
    %v289 = vadd.f32 0.0, %v288
    %v290 = vpop.f32.mrb[0].mxu0
    %291 = vdwg.mxu0
    %v292 = vadd.f32 %v51, %v230
    %v293 = vadd.f32 %v52, %v233
    %v294 = vadd.f32 %v53, %v238
    %v295 = vadd.f32 %v54, %v241
    %v296 = vadd.f32 %v55, %v246
    %v297 = vadd.f32 %v56, %v249
    %v298 = vadd.f32 %v57, %v254
    %v299 = vadd.f32 %v58, %v257
    %v300 = vadd.f32 %v59, %v262
    %v301 = vadd.f32 %v60, %v265
    %v302 = vadd.f32 %v61, %v270
    %v303 = vadd.f32 %v62, %v273
    %v304 = vadd.f32 %v63, %v278
    %v305 = vadd.f32 %v64, %v281
    %v306 = vadd.f32 %v65, %v286
    %v307 = vadd.f32 %v66, %v289
    %vm308 = vcmask 261120
    %309 = vst.msk [vmem:[#allocation2] sm:$0xff] %vm308, %v292
    %310 = vst.msk [vmem:[#allocation2 + $0x8] sm:$0xff] %vm308, %v293
    %311 = vst.msk [vmem:[#allocation2 + $0x10] sm:$0xff] %vm308, %v294
    %312 = vst.msk [vmem:[#allocation2 + $0x18] sm:$0xff] %vm308, %v295
    %313 = vst.msk [vmem:[#allocation2 + $0x20] sm:$0xff] %vm308, %v296
    %314 = vst.msk [vmem:[#allocation2 + $0x28] sm:$0xff] %vm308, %v297
    %315 = vst.msk [vmem:[#allocation2 + $0x30] sm:$0xff] %vm308, %v298
    %316 = vst.msk [vmem:[#allocation2 + $0x38] sm:$0xff] %vm308, %v299
    %317 = vst.msk [vmem:[#allocation2 + $0x40] sm:$0xff] %vm308, %v300
    %318 = vst.msk [vmem:[#allocation2 + $0x48] sm:$0xff] %vm308, %v301
    %319 = vst.msk [vmem:[#allocation2 + $0x50] sm:$0xff] %vm308, %v302
    %320 = vst.msk [vmem:[#allocation2 + $0x58] sm:$0xff] %vm308, %v303
    %321 = vst.msk [vmem:[#allocation2 + $0x60] sm:$0xff] %vm308, %v304
    %322 = vst.msk [vmem:[#allocation2 + $0x68] sm:$0xff] %vm308, %v305
    %323 = vst.msk [vmem:[#allocation2 + $0x70] sm:$0xff] %vm308, %v306
    %324 = vst.msk [vmem:[#allocation2 + $0x78] sm:$0xff] %vm308, %v307
    // Predicated region
    $region34: #{tpu_custom_call.1} parent=1 // pred_check
      %p325 = pneg %p30
    $region35: #{tpu_custom_call.1} parent=1 // pred_check_branch
      %327 = sbr.rel (%p325) target = $region37
    $region36: #{tpu_custom_call.1} parent=1 // pred_region
      %v328 = vld [vmem:[#allocation2] sm:$0xff]
      %v329 = vld [vmem:[#allocation2 + $0x8] sm:$0xff]
      %v330 = vld [vmem:[#allocation2 + $0x10] sm:$0xff]
      %v331 = vld [vmem:[#allocation2 + $0x18] sm:$0xff]
      %v332 = vld [vmem:[#allocation2 + $0x20] sm:$0xff]
      %v333 = vld [vmem:[#allocation2 + $0x28] sm:$0xff]
      %v334 = vld [vmem:[#allocation2 + $0x30] sm:$0xff]
      %v335 = vld [vmem:[#allocation2 + $0x38] sm:$0xff]
      %v336 = vld [vmem:[#allocation2 + $0x40] sm:$0xff]
      %v337 = vld [vmem:[#allocation2 + $0x48] sm:$0xff]
      %v338 = vld [vmem:[#allocation2 + $0x50] sm:$0xff]
      %v339 = vld [vmem:[#allocation2 + $0x58] sm:$0xff]
      %v340 = vld [vmem:[#allocation2 + $0x60] sm:$0xff]
      %v341 = vld [vmem:[#allocation2 + $0x68] sm:$0xff]
      %v342 = vld [vmem:[#allocation2 + $0x70] sm:$0xff]
      %v343 = vld [vmem:[#allocation2 + $0x78] sm:$0xff]
      %v344 = vld [vmem:[%s2] sm:$0x1]
      %v346 = vlaneseq
      %v347 = vshrl.u32 %v346, 7
      %v348 = vsub.s32 0, %v347
      %v349 = vrot.slane %v344, %v348
      %v351 = vadd.f32 %v328, %v349
      %v352 = vadd.f32 %v329, %v349
      %v353 = vadd.f32 %v330, %v349
      %v354 = vadd.f32 %v331, %v349
      %v355 = vadd.f32 %v332, %v349
      %v356 = vadd.f32 %v333, %v349
      %v357 = vadd.f32 %v334, %v349
      %v358 = vadd.f32 %v335, %v349
      %v359 = vadd.f32 %v336, %v349
      %v360 = vadd.f32 %v337, %v349
      %v361 = vadd.f32 %v338, %v349
      %v362 = vadd.f32 %v339, %v349
      %v363 = vadd.f32 %v340, %v349
      %v364 = vadd.f32 %v341, %v349
      %v365 = vadd.f32 %v342, %v349
      %v366 = vadd.f32 %v343, %v349
      %v367 = vmax.f32 %v351, 0.0
      %v368 = vmax.f32 %v352, 0.0
      %v369 = vmax.f32 %v353, 0.0
      %v370 = vmax.f32 %v354, 0.0
      %v371 = vmax.f32 %v355, 0.0
      %v372 = vmax.f32 %v356, 0.0
      %v373 = vmax.f32 %v357, 0.0
      %v374 = vmax.f32 %v358, 0.0
      %v375 = vmax.f32 %v359, 0.0
      %v376 = vmax.f32 %v360, 0.0
      %v377 = vmax.f32 %v361, 0.0
      %v378 = vmax.f32 %v362, 0.0
      %v379 = vmax.f32 %v363, 0.0
      %v380 = vmax.f32 %v364, 0.0
      %v381 = vmax.f32 %v365, 0.0
      %v382 = vmax.f32 %v366, 0.0
      %v383 = vpack.c.bf16 %v368, %v367
      %v384 = vpack.c.bf16 %v370, %v369
      %v385 = vpack.c.bf16 %v372, %v371
      %v386 = vpack.c.bf16 %v374, %v373
      %v387 = vpack.c.bf16 %v376, %v375
      %v388 = vpack.c.bf16 %v378, %v377
      %v389 = vpack.c.bf16 %v380, %v379
      %v390 = vpack.c.bf16 %v382, %v381
      %v391 = vld [vmem:[%s3] sm:$0xf]
      %v392 = vld [vmem:[%s3 + $0x4] sm:$0xf]
      %v393 = vld [vmem:[%s3 + $0x8] sm:$0xf]
      %v394 = vld [vmem:[%s3 + $0xc] sm:$0xf]
      %v395 = vld [vmem:[%s4] sm:$0x1]
      %v397 = vlaneseq
      %v398 = vshrl.u32 %v397, 7
      %v399 = vsub.s32 0, %v398
      %v400 = vrot.slane %v395, %v399
      %v406 = vunpack.c.l.b16 %v391
      %v407 = vunpack.c.l.b16 %v392
      %v408 = vunpack.c.l.b16 %v393
      %v409 = vunpack.c.l.b16 %v394
      %v410 = vpack.c.b16 %v407, %v406
      %v411 = vpack.c.b16 %v409, %v408
      %v415 = vsel %vm308, %v383, 0
      %v418 = vsel %vm308, %v384, 0
      %v421 = vsel %vm308, %v385, 0
      %v424 = vsel %vm308, %v386, 0
      %v427 = vsel %vm308, %v387, 0
      %v430 = vsel %vm308, %v388, 0
      %v433 = vsel %vm308, %v389, 0
      %v436 = vsel %vm308, %v390, 0
      %438 = vmatprep.subr.bf16.mxu0 0
      %439 = vmatpush1.bf16.msra.mxu0 %v410
      %440 = vmatprep.subr.bf16.mxu0 0
      %441 = vmatpush1.bf16.msra.mxu0 %v411
      %442 = vmatprep.subr.bf16.mxu0 0
      %443 = vmatpush1.bf16.msra.mxu0 0
      %444 = vmatprep.subr.bf16.mxu0 0
      %445 = vmatpush1.bf16.msra.mxu0 0
      %446 = vmatprep.subr.bf16.mxu0 0
      %447 = vmatpush1.bf16.msra.mxu0 0
      %448 = vmatprep.subr.bf16.mxu0 0
      %449 = vmatpush1.bf16.msra.mxu0 0
      %450 = vmatprep.subr.bf16.mxu0 0
      %451 = vmatpush1.bf16.msra.mxu0 0
      %452 = vmatprep.subr.bf16.mxu0 0
      %453 = vmatpush1.bf16.msra.mxu0 0
      %454 = vmatprep.subr.bf16.mxu0 0
      %455 = vmatpush1.bf16.msra.mxu0 0
      %456 = vmatprep.subr.bf16.mxu0 0
      %457 = vmatpush1.bf16.msra.mxu0 0
      %458 = vmatprep.subr.bf16.mxu0 0
      %459 = vmatpush1.bf16.msra.mxu0 0
      %460 = vmatprep.subr.bf16.mxu0 0
      %461 = vmatpush1.bf16.msra.mxu0 0
      %462 = vmatprep.subr.bf16.mxu0 0
      %463 = vmatpush1.bf16.msra.mxu0 0
      %464 = vmatprep.subr.bf16.mxu0 0
      %465 = vmatpush1.bf16.msra.mxu0 0
      %466 = vmatprep.subr.bf16.mxu0 0
      %467 = vmatpush1.bf16.msra.mxu0 0
      %468 = vmatprep.subr.bf16.mxu0 0
      %469 = vmatpush1.bf16.msra.mxu0 0
      %470 = vmatprep.mubr.bf16.mxu0 0
      %471 = vmatmul.mubr.bf16.gmra.mrb[0].mxu0 %v415
      %v472 = vpop.f32.mrb[0].mxu0
      %v473 = vadd.f32 %v400, %v472
      %v474 = vpop.f32.mrb[0].mxu0
      %v475 = vpop.f32.mrb[0].mxu0
      %v476 = vadd.f32 %v400, %v475
      %v477 = vpop.f32.mrb[0].mxu0
      %478 = vmatprep.mubr.bf16.mxu0 0
      %479 = vmatmul.mubr.bf16.gmra.mrb[0].mxu0 %v418
      %v480 = vpop.f32.mrb[0].mxu0
      %v481 = vadd.f32 %v400, %v480
      %v482 = vpop.f32.mrb[0].mxu0
      %v483 = vpop.f32.mrb[0].mxu0
      %v484 = vadd.f32 %v400, %v483
      %v485 = vpop.f32.mrb[0].mxu0
      %486 = vmatprep.mubr.bf16.mxu0 0
      %487 = vmatmul.mubr.bf16.gmra.mrb[0].mxu0 %v421
      %v488 = vpop.f32.mrb[0].mxu0
      %v489 = vadd.f32 %v400, %v488
      %v490 = vpop.f32.mrb[0].mxu0
      %v491 = vpop.f32.mrb[0].mxu0
      %v492 = vadd.f32 %v400, %v491
      %v493 = vpop.f32.mrb[0].mxu0
      %494 = vmatprep.mubr.bf16.mxu0 0
      %495 = vmatmul.mubr.bf16.gmra.mrb[0].mxu0 %v424
      %v496 = vpop.f32.mrb[0].mxu0
      %v497 = vadd.f32 %v400, %v496
      %v498 = vpop.f32.mrb[0].mxu0
      %v499 = vpop.f32.mrb[0].mxu0
      %v500 = vadd.f32 %v400, %v499
      %v501 = vpop.f32.mrb[0].mxu0
      %502 = vmatprep.mubr.bf16.mxu0 0
      %503 = vmatmul.mubr.bf16.gmra.mrb[0].mxu0 %v427
      %v504 = vpop.f32.mrb[0].mxu0
      %v505 = vadd.f32 %v400, %v504
      %v506 = vpop.f32.mrb[0].mxu0
      %v507 = vpop.f32.mrb[0].mxu0
      %v508 = vadd.f32 %v400, %v507
      %v509 = vpop.f32.mrb[0].mxu0
      %510 = vmatprep.mubr.bf16.mxu0 0
      %511 = vmatmul.mubr.bf16.gmra.mrb[0].mxu0 %v430
      %v512 = vpop.f32.mrb[0].mxu0
      %v513 = vadd.f32 %v400, %v512
      %v514 = vpop.f32.mrb[0].mxu0
      %v515 = vpop.f32.mrb[0].mxu0
      %v516 = vadd.f32 %v400, %v515
      %v517 = vpop.f32.mrb[0].mxu0
      %518 = vmatprep.mubr.bf16.mxu0 0
      %519 = vmatmul.mubr.bf16.gmra.mrb[0].mxu0 %v433
      %v520 = vpop.f32.mrb[0].mxu0
      %v521 = vadd.f32 %v400, %v520
      %v522 = vpop.f32.mrb[0].mxu0
      %v523 = vpop.f32.mrb[0].mxu0
      %v524 = vadd.f32 %v400, %v523
      %v525 = vpop.f32.mrb[0].mxu0
      %526 = vmatprep.mubr.bf16.mxu0 0
      %527 = vmatmul.mubr.bf16.gmra.mrb[0].mxu0 %v436
      %v528 = vpop.f32.mrb[0].mxu0
      %v529 = vadd.f32 %v400, %v528
      %v530 = vpop.f32.mrb[0].mxu0
      %v531 = vpop.f32.mrb[0].mxu0
      %v532 = vadd.f32 %v400, %v531
      %v533 = vpop.f32.mrb[0].mxu0
      %534 = vdwg.mxu0
      %v535 = vmax.f32 %v473, 0.0
      %v536 = vmax.f32 %v476, 0.0
      %v537 = vmax.f32 %v481, 0.0
      %v538 = vmax.f32 %v484, 0.0
      %v539 = vmax.f32 %v489, 0.0
      %v540 = vmax.f32 %v492, 0.0
      %v541 = vmax.f32 %v497, 0.0
      %v542 = vmax.f32 %v500, 0.0
      %v543 = vmax.f32 %v505, 0.0
      %v544 = vmax.f32 %v508, 0.0
      %v545 = vmax.f32 %v513, 0.0
      %v546 = vmax.f32 %v516, 0.0
      %v547 = vmax.f32 %v521, 0.0
      %v548 = vmax.f32 %v524, 0.0
      %v549 = vmax.f32 %v529, 0.0
      %v550 = vmax.f32 %v532, 0.0
      %551 = vst.msk [vmem:[%s7] sm:$0xff] %vm308, %v535
      %552 = vst.msk [vmem:[%s7 + $0x8] sm:$0xff] %vm308, %v536
      %553 = vst.msk [vmem:[%s7 + $0x10] sm:$0xff] %vm308, %v537
      %554 = vst.msk [vmem:[%s7 + $0x18] sm:$0xff] %vm308, %v538
      %555 = vst.msk [vmem:[%s7 + $0x20] sm:$0xff] %vm308, %v539
      %556 = vst.msk [vmem:[%s7 + $0x28] sm:$0xff] %vm308, %v540
      %557 = vst.msk [vmem:[%s7 + $0x30] sm:$0xff] %vm308, %v541
      %558 = vst.msk [vmem:[%s7 + $0x38] sm:$0xff] %vm308, %v542
      %559 = vst.msk [vmem:[%s7 + $0x40] sm:$0xff] %vm308, %v543
      %560 = vst.msk [vmem:[%s7 + $0x48] sm:$0xff] %vm308, %v544
      %561 = vst.msk [vmem:[%s7 + $0x50] sm:$0xff] %vm308, %v545
      %562 = vst.msk [vmem:[%s7 + $0x58] sm:$0xff] %vm308, %v546
      %563 = vst.msk [vmem:[%s7 + $0x60] sm:$0xff] %vm308, %v547
      %564 = vst.msk [vmem:[%s7 + $0x68] sm:$0xff] %vm308, %v548
      %565 = vst.msk [vmem:[%s7 + $0x70] sm:$0xff] %vm308, %v549
      %566 = vst.msk [vmem:[%s7 + $0x78] sm:$0xff] %vm308, %v550
      %v567 = vpack.c.bf16 %v536, %v535
      %v568 = vpack.c.bf16 %v538, %v537
      %v569 = vpack.c.bf16 %v540, %v539
      %v570 = vpack.c.bf16 %v542, %v541
      %v571 = vpack.c.bf16 %v544, %v543
      %v572 = vpack.c.bf16 %v546, %v545
      %v573 = vpack.c.bf16 %v548, %v547
      %v574 = vpack.c.bf16 %v550, %v549
      %v575 = vld [vmem:[%s5] sm:$0xf]
      %v576 = vld [vmem:[%s5 + $0x4] sm:$0xf]
      %v577 = vld [vmem:[%s5 + $0x8] sm:$0xf]
      %v578 = vld [vmem:[%s5 + $0xc] sm:$0xf]
      %v579 = vld [vmem:[%s6] sm:$0x1]
      %v581 = vlaneseq
      %v582 = vshrl.u32 %v581, 7
      %v583 = vsub.s32 0, %v582
      %v584 = vrot.slane %v579, %v583
      %v590 = vunpack.c.l.b16 %v575
      %v591 = vunpack.c.l.b16 %v576
      %v592 = vunpack.c.l.b16 %v577
      %v593 = vunpack.c.l.b16 %v578
      %v594 = vpack.c.b16 %v591, %v590
      %v595 = vpack.c.b16 %v593, %v592
      %v599 = vsel %vm308, %v567, 0
      %v602 = vsel %vm308, %v568, 0
      %v605 = vsel %vm308, %v569, 0
      %v608 = vsel %vm308, %v570, 0
      %v611 = vsel %vm308, %v571, 0
      %v614 = vsel %vm308, %v572, 0
      %v617 = vsel %vm308, %v573, 0
      %v620 = vsel %vm308, %v574, 0
      %622 = vmatprep.subr.bf16.mxu0 0
      %623 = vmatpush1.bf16.msra.mxu0 %v594
      %624 = vmatprep.subr.bf16.mxu0 0
      %625 = vmatpush1.bf16.msra.mxu0 %v595
      %626 = vmatprep.subr.bf16.mxu0 0
      %627 = vmatpush1.bf16.msra.mxu0 0
      %628 = vmatprep.subr.bf16.mxu0 0
      %629 = vmatpush1.bf16.msra.mxu0 0
      %630 = vmatprep.subr.bf16.mxu0 0
      %631 = vmatpush1.bf16.msra.mxu0 0
      %632 = vmatprep.subr.bf16.mxu0 0
      %633 = vmatpush1.bf16.msra.mxu0 0
      %634 = vmatprep.subr.bf16.mxu0 0
      %635 = vmatpush1.bf16.msra.mxu0 0
      %636 = vmatprep.subr.bf16.mxu0 0
      %637 = vmatpush1.bf16.msra.mxu0 0
      %638 = vmatprep.subr.bf16.mxu0 0
      %639 = vmatpush1.bf16.msra.mxu0 0
      %640 = vmatprep.subr.bf16.mxu0 0
      %641 = vmatpush1.bf16.msra.mxu0 0
      %642 = vmatprep.subr.bf16.mxu0 0
      %643 = vmatpush1.bf16.msra.mxu0 0
      %644 = vmatprep.subr.bf16.mxu0 0
      %645 = vmatpush1.bf16.msra.mxu0 0
      %646 = vmatprep.subr.bf16.mxu0 0
      %647 = vmatpush1.bf16.msra.mxu0 0
      %648 = vmatprep.subr.bf16.mxu0 0
      %649 = vmatpush1.bf16.msra.mxu0 0
      %650 = vmatprep.subr.bf16.mxu0 0
      %651 = vmatpush1.bf16.msra.mxu0 0
      %652 = vmatprep.subr.bf16.mxu0 0
      %653 = vmatpush1.bf16.msra.mxu0 0
      %654 = vmatprep.mubr.bf16.mxu0 0
      %655 = vmatmul.mubr.bf16.gmra.mrb[0].mxu0 %v599
      %v656 = vpop.f32.mrb[0].mxu0
      %v657 = vadd.f32 %v584, %v656
      %v658 = vpop.f32.mrb[0].mxu0
      %v659 = vpop.f32.mrb[0].mxu0
      %v660 = vadd.f32 %v584, %v659
      %v661 = vpop.f32.mrb[0].mxu0
      %662 = vmatprep.mubr.bf16.mxu0 0
      %663 = vmatmul.mubr.bf16.gmra.mrb[0].mxu0 %v602
      %v664 = vpop.f32.mrb[0].mxu0
      %v665 = vadd.f32 %v584, %v664
      %v666 = vpop.f32.mrb[0].mxu0
      %v667 = vpop.f32.mrb[0].mxu0
      %v668 = vadd.f32 %v584, %v667
      %v669 = vpop.f32.mrb[0].mxu0
      %670 = vmatprep.mubr.bf16.mxu0 0
      %671 = vmatmul.mubr.bf16.gmra.mrb[0].mxu0 %v605
      %v672 = vpop.f32.mrb[0].mxu0
      %v673 = vadd.f32 %v584, %v672
      %v674 = vpop.f32.mrb[0].mxu0
      %v675 = vpop.f32.mrb[0].mxu0
      %v676 = vadd.f32 %v584, %v675
      %v677 = vpop.f32.mrb[0].mxu0
      %678 = vmatprep.mubr.bf16.mxu0 0
      %679 = vmatmul.mubr.bf16.gmra.mrb[0].mxu0 %v608
      %v680 = vpop.f32.mrb[0].mxu0
      %v681 = vadd.f32 %v584, %v680
      %v682 = vpop.f32.mrb[0].mxu0
      %v683 = vpop.f32.mrb[0].mxu0
      %v684 = vadd.f32 %v584, %v683
      %v685 = vpop.f32.mrb[0].mxu0
      %686 = vmatprep.mubr.bf16.mxu0 0
      %687 = vmatmul.mubr.bf16.gmra.mrb[0].mxu0 %v611
      %v688 = vpop.f32.mrb[0].mxu0
      %v689 = vadd.f32 %v584, %v688
      %v690 = vpop.f32.mrb[0].mxu0
      %v691 = vpop.f32.mrb[0].mxu0
      %v692 = vadd.f32 %v584, %v691
      %v693 = vpop.f32.mrb[0].mxu0
      %694 = vmatprep.mubr.bf16.mxu0 0
      %695 = vmatmul.mubr.bf16.gmra.mrb[0].mxu0 %v614
      %v696 = vpop.f32.mrb[0].mxu0
      %v697 = vadd.f32 %v584, %v696
      %v698 = vpop.f32.mrb[0].mxu0
      %v699 = vpop.f32.mrb[0].mxu0
      %v700 = vadd.f32 %v584, %v699
      %v701 = vpop.f32.mrb[0].mxu0
      %702 = vmatprep.mubr.bf16.mxu0 0
      %703 = vmatmul.mubr.bf16.gmra.mrb[0].mxu0 %v617
      %v704 = vpop.f32.mrb[0].mxu0
      %v705 = vadd.f32 %v584, %v704
      %v706 = vpop.f32.mrb[0].mxu0
      %v707 = vpop.f32.mrb[0].mxu0
      %v708 = vadd.f32 %v584, %v707
      %v709 = vpop.f32.mrb[0].mxu0
      %710 = vmatprep.mubr.bf16.mxu0 0
      %711 = vmatmul.mubr.bf16.gmra.mrb[0].mxu0 %v620
      %v712 = vpop.f32.mrb[0].mxu0
      %v713 = vadd.f32 %v584, %v712
      %v714 = vpop.f32.mrb[0].mxu0
      %v715 = vpop.f32.mrb[0].mxu0
      %v716 = vadd.f32 %v584, %v715
      %v717 = vpop.f32.mrb[0].mxu0
      %718 = vdwg.mxu0
      %719 = vst [vmem:[#allocation3] sm:$0xff] %v657
      %720 = vst [vmem:[#allocation3 + $0x8] sm:$0xff] %v660
      %721 = vst [vmem:[#allocation3 + $0x10] sm:$0xff] %v665
      %722 = vst [vmem:[#allocation3 + $0x18] sm:$0xff] %v668
      %723 = vst [vmem:[#allocation3 + $0x20] sm:$0xff] %v673
      %724 = vst [vmem:[#allocation3 + $0x28] sm:$0xff] %v676
      %725 = vst [vmem:[#allocation3 + $0x30] sm:$0xff] %v681
      %726 = vst [vmem:[#allocation3 + $0x38] sm:$0xff] %v684
      %727 = vst [vmem:[#allocation3 + $0x40] sm:$0xff] %v689
      %728 = vst [vmem:[#allocation3 + $0x48] sm:$0xff] %v692
      %729 = vst [vmem:[#allocation3 + $0x50] sm:$0xff] %v697
      %730 = vst [vmem:[#allocation3 + $0x58] sm:$0xff] %v700
      %731 = vst [vmem:[#allocation3 + $0x60] sm:$0xff] %v705
      %732 = vst [vmem:[#allocation3 + $0x68] sm:$0xff] %v708
      %733 = vst [vmem:[#allocation3 + $0x70] sm:$0xff] %v713
      %734 = vst [vmem:[#allocation3 + $0x78] sm:$0xff] %v716
    $region37: #{tpu_custom_call.1} parent=1 // pred_fallthru
      _
    // Predicated region
    $region38: #{tpu_custom_call.1} parent=1 // pred_check
      _
    $region39: #{tpu_custom_call.1} parent=1 // pred_check_branch
      %736 = sbr.rel (0) target = $region41
    $region40: #{tpu_custom_call.1} parent=1 // pred_region
      _
    $region41: #{tpu_custom_call.1} parent=1 // pred_fallthru
      _
    // Predicated region
    $region42: #{tpu_custom_call.1} parent=1 // pred_check
      _
    $region43: #{tpu_custom_call.1} parent=1 // pred_check_branch
      %738 = sbr.rel (0) target = $region45
    $region44: #{tpu_custom_call.1} parent=1 // pred_region
      %s740 = ssub.s32 2048, 2048
      %741 = vsyncadd [#allocation4], %s740
      %s742 = sshll.u32 [#allocation3], 4
      %s743 = int_to_ptr.vmem [resolvable:$true] %s742
      %748 = dma.vmem_to_hbm [thread:$0]  %s743, 2048, %s8, [#allocation4], 128, 128, 8
    $region45: #{tpu_custom_call.1} parent=1 // pred_fallthru
      _
    // Predicated region
    $region46: #{tpu_custom_call.1} parent=1 // pred_check
      _
    $region47: #{tpu_custom_call.1} parent=1 // pred_check_branch
      %750 = sbr.rel (0) target = $region49
    $region48: #{tpu_custom_call.1} parent=1 // pred_region
      _
    $region49: #{tpu_custom_call.1} parent=1 // pred_fallthru
      _
    // Predicated region
    $region50: #{tpu_custom_call.1} parent=1 // pred_check
      _
    $region51: #{tpu_custom_call.1} parent=1 // pred_check_branch
      %752 = sbr.rel (0) target = $region53
    $region52: #{tpu_custom_call.1} parent=1 // pred_region
      %753 = dma.done [#allocation4], 2048
    $region53: #{tpu_custom_call.1} parent=1 // pred_fallthru
      _
    %754 = vsyncpa [#allocation4], 1

</llo_original>
